<compile_context>
chip_gen: v6e
topology: v6e:2x2x1
jax: 0.10.0
libtpu: 0.0.40
codegen_flags: <defaults>
</compile_context>

<pallas_src>
import jax
import jax.numpy as jnp
from jax import lax
from jax.experimental import pallas as pl
from jax.experimental.pallas import tpu as pltpu


def _round_up(a, b):
    return (a + b - 1) // b * b


def _outconv_kernel(w_ref, b_ref, x_ref, o_ref):
    # w_ref: (C_out, C_in)     b_ref: (C_out, 1)
    # x_ref: (Bn, C_in, THW)   o_ref: (Bn, C_out, THW)
    w = w_ref[...]
    bias = b_ref[...]
    bn = x_ref.shape[0]

    def body(b, carry):
        acc = jnp.dot(
            w,
            x_ref[b],
            preferred_element_type=jnp.float32,
            precision=lax.Precision.HIGHEST,
        )
        o_ref[b] = (acc + bias).astype(o_ref.dtype)
        return carry

    # Short, fully-unrolled loop over the batch block (bn is a small static int).
    lax.fori_loop(0, bn, body, 0, unroll=True)


def out_conv(
    x_nchw,
    weight,
    bias,
    *,
    target_step_bytes=2 << 20,   # ~2 MiB of useful HBM traffic per grid step
    max_batch_block=8,           # cap on in-kernel unroll over batch
    min_grid_steps=8,            # keep both v7x TensorCores fed when possible
):
    """1x1 Conv2d forward matching torch.nn.Conv2d(in, out, kernel_size=1).

    x_nchw: (N, C_in, H, W)
    weight: (C_out, C_in, 1, 1)  (PyTorch conv weight layout)
    bias:   (C_out,)
    returns (N, C_out, H, W)
    """
    N, C_in, H, W = x_nchw.shape
    C_out = weight.shape[0]
    HW = H * W
    itemsize = jnp.dtype(x_nchw.dtype).itemsize

    # Free reshapes only (no transpose => no extra HBM traffic).
    x3 = x_nchw.reshape(N, C_in, HW)
    w_mat = weight.reshape(C_out, C_in)
    b_col = bias.reshape(C_out, 1)

    LANE = 128
    # Useful HBM bytes moved per spatial position per image (read + write).
    bytes_per_lane = (C_in + C_out) * itemsize

    # ---- spatial tile: lane-dense, sized from the byte budget --------------
    budget_lanes = max(LANE, (target_step_bytes // bytes_per_lane) // LANE * LANE)
    if HW <= budget_lanes:
        thw = HW                 # block == full array dim -> always legal
    else:
        thw = budget_lanes       # multiple of 128 -> unmasked dense vst
    n_sp = pl.cdiv(HW, thw)

    # ---- batch blocking when spatial alone can't fill the budget -----------
    step_bytes = thw * bytes_per_lane
    bn = 1
    if step_bytes < target_step_bytes:
        bn = int(min(N, max(1, target_step_bytes // max(step_bytes, 1)),
                     max_batch_block))
    # Back off batch blocking (keep >= min_grid_steps) only while per-step
    # traffic would stay reasonably large (>= ~512 KiB).
    while (bn > 1 and pl.cdiv(N, bn) * n_sp < min_grid_steps
           and (bn - 1) * step_bytes >= (512 << 10)):
        bn -= 1
    n_b = pl.cdiv(N, bn)

    # ---- scoped-VMEM budget (explicit: v5e default is only 16 MiB) ---------
    in_tile = bn * _round_up(C_in, 8) * _round_up(thw, LANE) * itemsize
    out_tile = bn * _round_up(C_out, 8) * _round_up(thw, LANE) * itemsize
    vmem_needed = 2 * (in_tile + out_tile) + (4 << 20)   # double-buffered + margin
    vmem_limit = int(min(max(vmem_needed, 32 << 20), 40 << 20))

    cost = pl.CostEstimate(
        flops=2 * N * C_out * C_in * HW,
        bytes_accessed=itemsize * (N * C_in * HW + N * C_out * HW)
        + 4 * (C_out * C_in + C_out),
        transcendentals=0,
    )

    out3 = pl.pallas_call(
        _outconv_kernel,
        out_shape=jax.ShapeDtypeStruct((N, C_out, HW), x_nchw.dtype),
        grid_spec=pltpu.PrefetchScalarGridSpec(
            num_scalar_prefetch=0,
            grid=(n_b, n_sp),
            in_specs=[
                # Weight / bias: constant block index -> fetched once, resident.
                pl.BlockSpec((C_out, C_in), lambda n, s: (0, 0)),
                pl.BlockSpec((C_out, 1), lambda n, s: (0, 0)),
                # Activations: (Bn batch block, C_in sublanes, THW lanes).
                pl.BlockSpec((bn, C_in, thw), lambda n, s: (n, 0, s)),
            ],
            out_specs=pl.BlockSpec((bn, C_out, thw), lambda n, s: (n, 0, s)),
        ),
        compiler_params=pltpu.CompilerParams(
            dimension_semantics=("parallel", "parallel"),
            vmem_limit_bytes=vmem_limit,
        ),
        cost_estimate=cost,
    )(w_mat, b_col, x3)

    return out3.reshape(N, C_out, H, W)


if __name__ == "__main__":
    key = jax.random.PRNGKey(0)
    k_x, k_w, k_b = jax.random.split(key, 3)

    N, C_in, C_out, H, W = 2, 4, 3, 16, 16

    x = jax.random.normal(k_x, (N, C_in, H, W), dtype=jnp.float32)
    # Deterministic synthetic params (PyTorch-like fan_in scaling, fixed seed).
    bound = 1.0 / jnp.sqrt(jnp.float32(C_in))
    weight = jax.random.uniform(
        k_w, (C_out, C_in, 1, 1), dtype=jnp.float32, minval=-bound, maxval=bound
    )
    bias = jax.random.uniform(
        k_b, (C_out,), dtype=jnp.float32, minval=-bound, maxval=bound
    )

    y = out_conv(x, weight, bias)
    jax.block_until_ready(y)

    # Sanity check vs. plain-JAX reference of the same 1x1 conv.
    ref = (
        jnp.einsum("nchw,oc->nohw", x, weight.reshape(C_out, C_in))
        + bias.reshape(1, C_out, 1, 1)
    )
    assert y.shape == (N, C_out, H, W)
    assert jnp.allclose(y, ref, atol=1e-5, rtol=1e-5)

    print("KERNEL_OK")
</pallas_src>

<mosaic_0001>
module attributes {stable_mosaic.version = 11 : i64} {
  func.func @_outconv_kernel(%arg0: i32, %arg1: i32, %arg2: memref<3x4xf32, #tpu.memory_space<vmem>>, %arg3: memref<3x1xf32, #tpu.memory_space<vmem>>, %arg4: memref<2x4x256xf32, #tpu.memory_space<vmem>>, %arg5: memref<2x3x256xf32, #tpu.memory_space<vmem>>) attributes {dimension_semantics = [#tpu.dimension_semantics<parallel>, #tpu.dimension_semantics<parallel>], iteration_bounds = array<i64: 1, 1>, scalar_prefetch = 0 : i64, scratch_operands = 0 : i64, tpu.core_type = #tpu.core_type<tc>, window_params = [{pipeline_mode = #tpu.pipeline_mode<synchronous>, transform_indices = @transform_0, window_bounds = array<i64: 3, 4>}, {pipeline_mode = #tpu.pipeline_mode<synchronous>, transform_indices = @transform_1, window_bounds = array<i64: 3, 1>}, {transform_indices = @transform_2, window_bounds = array<i64: 2, 4, 256>}, {transform_indices = @transform_3, window_bounds = array<i64: 2, 3, 256>}]} {
    %c0 = arith.constant 0 : index
    %c0_0 = arith.constant 0 : index
    %0 = vector.load %arg2[%c0, %c0_0] : memref<3x4xf32, #tpu.memory_space<vmem>>, vector<3x4xf32>
    %c0_1 = arith.constant 0 : index
    %c0_2 = arith.constant 0 : index
    %1 = vector.load %arg3[%c0_1, %c0_2] : memref<3x1xf32, #tpu.memory_space<vmem>>, vector<3x1xf32>
    %c0_i32 = arith.constant 0 : i32
    %2 = arith.index_cast %c0_i32 : i32 to index
    %c0_3 = arith.constant 0 : index
    %c0_4 = arith.constant 0 : index
    %3 = vector.load %arg4[%2, %c0_3, %c0_4] : memref<2x4x256xf32, #tpu.memory_space<vmem>>, vector<1x4x256xf32>
    %4 = vector.shape_cast %3 : vector<1x4x256xf32> to vector<4x256xf32>
    %cst = arith.constant dense<0.000000e+00> : vector<3x256xf32>
    %5 = tpu.matmul %0, %4, %cst {dimension_numbers = #tpu.dot_dimension_numbers<[1], [0], [0], [1], [0, 0, 1, 1], [], []>, precision = #tpu.contract_precision<fp32>} : vector<3x4xf32>, vector<4x256xf32>, vector<3x256xf32> -> vector<3x256xf32>
    %6 = vector.broadcast %1 : vector<3x1xf32> to vector<3x256xf32>
    %7 = arith.addf %5, %6 : vector<3x256xf32>
    %8 = arith.index_cast %c0_i32 : i32 to index
    %c0_5 = arith.constant 0 : index
    %c0_6 = arith.constant 0 : index
    %9 = vector.load %arg5[%8, %c0_5, %c0_6] : memref<2x3x256xf32, #tpu.memory_space<vmem>>, vector<1x3x256xf32>
    %10 = vector.shape_cast %9 : vector<1x3x256xf32> to vector<3x256xf32>
    %11 = vector.shape_cast %7 : vector<3x256xf32> to vector<1x3x256xf32>
    tpu.vector_store %arg5[%8, %c0_5, %c0_6], %11 {strides = array<i32>} : memref<2x3x256xf32, #tpu.memory_space<vmem>>, vector<1x3x256xf32>,
    %c1_i32 = arith.constant 1 : i32
    %12 = arith.index_cast %c1_i32 : i32 to index
    %c0_7 = arith.constant 0 : index
    %c0_8 = arith.constant 0 : index
    %13 = vector.load %arg4[%12, %c0_7, %c0_8] : memref<2x4x256xf32, #tpu.memory_space<vmem>>, vector<1x4x256xf32>
    %14 = vector.shape_cast %13 : vector<1x4x256xf32> to vector<4x256xf32>
    %cst_9 = arith.constant dense<0.000000e+00> : vector<3x256xf32>
    %15 = tpu.matmul %0, %14, %cst_9 {dimension_numbers = #tpu.dot_dimension_numbers<[1], [0], [0], [1], [0, 0, 1, 1], [], []>, precision = #tpu.contract_precision<fp32>} : vector<3x4xf32>, vector<4x256xf32>, vector<3x256xf32> -> vector<3x256xf32>
    %16 = vector.broadcast %1 : vector<3x1xf32> to vector<3x256xf32>
    %17 = arith.addf %15, %16 : vector<3x256xf32>
    %18 = arith.index_cast %c1_i32 : i32 to index
    %c0_10 = arith.constant 0 : index
    %c0_11 = arith.constant 0 : index
    %19 = vector.load %arg5[%18, %c0_10, %c0_11] : memref<2x3x256xf32, #tpu.memory_space<vmem>>, vector<1x3x256xf32>
    %20 = vector.shape_cast %19 : vector<1x3x256xf32> to vector<3x256xf32>
    %21 = vector.shape_cast %17 : vector<3x256xf32> to vector<1x3x256xf32>
    tpu.vector_store %arg5[%18, %c0_10, %c0_11], %21 {strides = array<i32>} : memref<2x3x256xf32, #tpu.memory_space<vmem>>, vector<1x3x256xf32>,
    %c2_i32 = arith.constant 2 : i32
    return
  }
  func.func @transform_0(%arg0: i32, %arg1: i32) -> (i32, i32) {
    %c0_i32 = arith.constant 0 : i32
    %c0_i32_0 = arith.constant 0 : i32
    %c0_i32_1 = arith.constant 0 : i32
    return %c0_i32, %c0_i32_0 : i32, i32
  }
  func.func @transform_1(%arg0: i32, %arg1: i32) -> (i32, i32) {
    %c0_i32 = arith.constant 0 : i32
    %c0_i32_0 = arith.constant 0 : i32
    %c0_i32_1 = arith.constant 0 : i32
    return %c0_i32, %c0_i32_0 : i32, i32
  }
  func.func @transform_2(%arg0: i32, %arg1: i32) -> (i32, i32, i32) {
    %c0_i32 = arith.constant 0 : i32
    %c0_i32_0 = arith.constant 0 : i32
    return %arg0, %c0_i32, %arg1 : i32, i32, i32
  }
  func.func @transform_3(%arg0: i32, %arg1: i32) -> (i32, i32, i32) {
    %c0_i32 = arith.constant 0 : i32
    %c0_i32_0 = arith.constant 0 : i32
    return %arg0, %c0_i32, %arg1 : i32, i32, i32
  }
}

</mosaic_0001>

<llo_original>
// kernel: tpu_custom_call.1
$region0: #{tpu_custom_call.1}
  #allocation0 [shape = 'u32[]', space=smem, size = 0x4, offset = 0x4, fixed_abs, tag = 'smem constant byte address 0x4 - core index']
  #allocation1 [shape = 'u32[144,128]{1,0:T(1,128)}', space=vmem, size = 0x12000, scoped, tag = 'internal scratch']
  %s0 = inlined_call_operand.vmem [shape: f32[3,4], index: 0, kind: input, shape index: {}]
  %s1 = inlined_call_operand.vmem [shape: f32[3,1], index: 1, kind: input, shape index: {}]
  %s2 = inlined_call_operand.hbm [shape: f32[2,4,256], index: 2, kind: input, shape index: {}]
  %s3 = inlined_call_operand.vmem [shape: f32[2,3,256], index: 3, kind: output, shape index: {}]
  %s4 = sld [smem:[#allocation0]]
  $region26: #{tpu_custom_call.1} parent=0
    _
  %s6 = ssub.s32 1, %s4
  %s7 = scalar_select 0, %s6, %s4
  $region1: #{tpu_custom_call.1} parent=0
    #allocation2 [shape = 'u8[8192]{0}', space=vmem, size = 0x2000, scoped, tag = 'input window, operand 2, single buffered']
    #allocation3 [shape = 's32[1]{0}', space=sflag, size = 0x4, scoped, tag = 'scoped memory for tpu_custom_call.1']
    %8 = vsyncpa [#allocation3], 0
    // Predicated region
    $region2: #{tpu_custom_call.1} parent=1 // pred_check
      _
    $region3: #{tpu_custom_call.1} parent=1 // pred_check_branch
      %10 = sbr.rel (0) target = $region5
    $region4: #{tpu_custom_call.1} parent=1 // pred_region
      _
    $region5: #{tpu_custom_call.1} parent=1 // pred_fallthru
      _
    // Predicated region
    $region6: #{tpu_custom_call.1} parent=1 // pred_check
      _
    $region7: #{tpu_custom_call.1} parent=1 // pred_check_branch
      %12 = sbr.rel (0) target = $region9
    $region8: #{tpu_custom_call.1} parent=1 // pred_region
      _
    $region9: #{tpu_custom_call.1} parent=1 // pred_fallthru
      _
    // Predicated region
    $region10: #{tpu_custom_call.1} parent=1 // pred_check
      _
    $region11: #{tpu_custom_call.1} parent=1 // pred_check_branch
      %14 = sbr.rel (0) target = $region13
    $region12: #{tpu_custom_call.1} parent=1 // pred_region
      %s16 = ssub.s32 256, 256
      %17 = vsyncadd [#allocation3], %s16
      %s18 = sshll.u32 [#allocation2], 4
      %s19 = int_to_ptr.vmem [resolvable:$true] %s18
      %24 = dma.hbm_to_vmem [thread:$0]  %s2, 256, %s19, [#allocation3], 128, 128, 8
    $region13: #{tpu_custom_call.1} parent=1 // pred_fallthru
      _
    // Predicated region
    $region14: #{tpu_custom_call.1} parent=1 // pred_check
      _
    $region15: #{tpu_custom_call.1} parent=1 // pred_check_branch
      %26 = sbr.rel (0) target = $region17
    $region16: #{tpu_custom_call.1} parent=1 // pred_region
      %27 = dma.done [#allocation3], 256
    $region17: #{tpu_custom_call.1} parent=1 // pred_fallthru
      _
    %v28 = vld [vmem:[%s0] sm:$0x7]
    %v29 = vld [vmem:[%s1] sm:$0x7]
    %v30 = vld [vmem:[#allocation2] sm:$0xff]
    %32 = vset.pattern.permute.xlu0 0
    %33 = vperm.xlu0 %32, %v29
    %v34 = vpop.permute.xlu0 %33
    %v37 = vcombine.high %v30, %v30
    %vm38 = vcmask 31744
    %v40 = vsel %vm38, %v28, 0
    %vm42 = vcmask 1043456
    %v43 = vsel %vm42, %v30, 0
    %v45 = vsel %vm42, %v37, 0
    %47 = vmatprep.subr.mxu0 0.0
    %48 = vmatpush1.msra.mxu0 0.0
    %49 = vmatprep.subr.mxu0 0.0
    %50 = vmatpush1.msra.mxu0 0.0
    %51 = vmatprep.subr.mxu0 0.0
    %52 = vmatpush1.msra.mxu0 0.0
    %53 = vmatprep.subr.mxu0 0.0
    %54 = vmatpush1.msra.mxu0 0.0
    %55 = vmatprep.subr.mxu0 0.0
    %56 = vmatpush1.msra.mxu0 0.0
    %57 = vmatprep.subr.mxu0 0.0
    %58 = vmatpush1.msra.mxu0 0.0
    %59 = vmatprep.subr.mxu0 0.0
    %60 = vmatpush1.msra.mxu0 0.0
    %61 = vmatprep.subr.mxu0 0.0
    %62 = vmatpush1.msra.mxu0 0.0
    %63 = vmatprep.subr.mxu0 0.0
    %64 = vmatpush1.msra.mxu0 0.0
    %65 = vmatprep.subr.mxu0 0.0
    %66 = vmatpush1.msra.mxu0 0.0
    %67 = vmatprep.subr.mxu0 0.0
    %68 = vmatpush1.msra.mxu0 0.0
    %69 = vmatprep.subr.mxu0 0.0
    %70 = vmatpush1.msra.mxu0 0.0
    %71 = vmatprep.subr.mxu0 0.0
    %72 = vmatpush1.msra.mxu0 0.0
    %73 = vmatprep.subr.mxu0 0.0
    %74 = vmatpush1.msra.mxu0 0.0
    %75 = vmatprep.subr.mxu0 0.0
    %76 = vmatpush1.msra.mxu0 0.0
    %v77 = vand.u32 %v45, 4294901760
    %78 = vmatprep.subr.mxu0 %v77
    %v79 = vand.u32 %v43, 4294901760
    %80 = vmatpush1.msra.mxu0 %v79
    %81 = vmatprep.subr.mxu0 0.0
    %82 = vmatpush2.msra.mxu0 0.0
    %83 = vmatprep.subr.mxu0 0.0
    %84 = vmatpush2.msra.mxu0 0.0
    %85 = vmatprep.subr.mxu0 0.0
    %86 = vmatpush2.msra.mxu0 0.0
    %87 = vmatprep.subr.mxu0 0.0
    %88 = vmatpush2.msra.mxu0 0.0
    %89 = vmatprep.subr.mxu0 0.0
    %90 = vmatpush2.msra.mxu0 0.0
    %91 = vmatprep.subr.mxu0 0.0
    %92 = vmatpush2.msra.mxu0 0.0
    %93 = vmatprep.subr.mxu0 0.0
    %94 = vmatpush2.msra.mxu0 0.0
    %95 = vmatprep.subr.mxu0 0.0
    %96 = vmatpush2.msra.mxu0 0.0
    %97 = vmatprep.subr.mxu0 0.0
    %98 = vmatpush2.msra.mxu0 0.0
    %99 = vmatprep.subr.mxu0 0.0
    %100 = vmatpush2.msra.mxu0 0.0
    %101 = vmatprep.subr.mxu0 0.0
    %102 = vmatpush2.msra.mxu0 0.0
    %103 = vmatprep.subr.mxu0 0.0
    %104 = vmatpush2.msra.mxu0 0.0
    %105 = vmatprep.subr.mxu0 0.0
    %106 = vmatpush2.msra.mxu0 0.0
    %107 = vmatprep.subr.mxu0 0.0
    %108 = vmatpush2.msra.mxu0 0.0
    %109 = vmatprep.subr.mxu0 0.0
    %110 = vmatpush2.msra.mxu0 0.0
    %111 = vmatprep.subr.mxu0 0.0
    %112 = vmatpush2.msra.mxu0 0.0
    %113 = vmatprep.mubr.f32.mxu0 0.0
    %v114 = vand.u32 %v40, 4294901760
    %v115 = vsub.f32 %v40, %v114
    %v116 = vand.u32 %v115, 4294901760
    %v117 = vsub.f32 %v115, %v116
    %v118 = vand.u32 %v117, 4294901760
    %119 = vmatmul.mubr.f32.gmra.mxu0 %v118
    %v120 = vpop.f32.mrf.mxu0
    %v121 = vadd.f32 %v34, %v120
    %v122 = vpop.f32.mrf.mxu0
    %v123 = vadd.f32 %v34, %v122
    %124 = vdwg.mxu0
    %125 = vmatprep.subr.mxu0 0.0
    %126 = vmatpush1.msra.mxu0 0.0
    %127 = vmatprep.subr.mxu0 0.0
    %128 = vmatpush1.msra.mxu0 0.0
    %129 = vmatprep.subr.mxu0 0.0
    %130 = vmatpush1.msra.mxu0 0.0
    %131 = vmatprep.subr.mxu0 0.0
    %132 = vmatpush1.msra.mxu0 0.0
    %133 = vmatprep.subr.mxu0 0.0
    %134 = vmatpush1.msra.mxu0 0.0
    %135 = vmatprep.subr.mxu0 0.0
    %136 = vmatpush1.msra.mxu0 0.0
    %137 = vmatprep.subr.mxu0 0.0
    %138 = vmatpush1.msra.mxu0 0.0
    %139 = vmatprep.subr.mxu0 0.0
    %140 = vmatpush1.msra.mxu0 0.0
    %141 = vmatprep.subr.mxu0 0.0
    %142 = vmatpush1.msra.mxu0 0.0
    %143 = vmatprep.subr.mxu0 0.0
    %144 = vmatpush1.msra.mxu0 0.0
    %145 = vmatprep.subr.mxu0 0.0
    %146 = vmatpush1.msra.mxu0 0.0
    %147 = vmatprep.subr.mxu0 0.0
    %148 = vmatpush1.msra.mxu0 0.0
    %149 = vmatprep.subr.mxu0 0.0
    %150 = vmatpush1.msra.mxu0 0.0
    %151 = vmatprep.subr.mxu0 0.0
    %152 = vmatpush1.msra.mxu0 0.0
    %153 = vmatprep.subr.mxu0 0.0
    %154 = vmatpush1.msra.mxu0 0.0
    %v155 = vand.u32 %v45, 4294901760
    %v156 = vsub.f32 %v45, %v155
    %v157 = vand.u32 %v156, 4294901760
    %v158 = vsub.f32 %v156, %v157
    %v159 = vand.u32 %v158, 4294901760
    %160 = vmatprep.subr.mxu0 %v159
    %v161 = vand.u32 %v43, 4294901760
    %v162 = vsub.f32 %v43, %v161
    %v163 = vand.u32 %v162, 4294901760
    %v164 = vsub.f32 %v162, %v163
    %v165 = vand.u32 %v164, 4294901760
    %166 = vmatpush1.msra.mxu0 %v165
    %167 = vmatprep.subr.mxu0 0.0
    %168 = vmatpush2.msra.mxu0 0.0
    %169 = vmatprep.subr.mxu0 0.0
    %170 = vmatpush2.msra.mxu0 0.0
    %171 = vmatprep.subr.mxu0 0.0
    %172 = vmatpush2.msra.mxu0 0.0
    %173 = vmatprep.subr.mxu0 0.0
    %174 = vmatpush2.msra.mxu0 0.0
    %175 = vmatprep.subr.mxu0 0.0
    %176 = vmatpush2.msra.mxu0 0.0
    %177 = vmatprep.subr.mxu0 0.0
    %178 = vmatpush2.msra.mxu0 0.0
    %179 = vmatprep.subr.mxu0 0.0
    %180 = vmatpush2.msra.mxu0 0.0
    %181 = vmatprep.subr.mxu0 0.0
    %182 = vmatpush2.msra.mxu0 0.0
    %183 = vmatprep.subr.mxu0 0.0
    %184 = vmatpush2.msra.mxu0 0.0
    %185 = vmatprep.subr.mxu0 0.0
    %186 = vmatpush2.msra.mxu0 0.0
    %187 = vmatprep.subr.mxu0 0.0
    %188 = vmatpush2.msra.mxu0 0.0
    %189 = vmatprep.subr.mxu0 0.0
    %190 = vmatpush2.msra.mxu0 0.0
    %191 = vmatprep.subr.mxu0 0.0
    %192 = vmatpush2.msra.mxu0 0.0
    %193 = vmatprep.subr.mxu0 0.0
    %194 = vmatpush2.msra.mxu0 0.0
    %195 = vmatprep.subr.mxu0 0.0
    %196 = vmatpush2.msra.mxu0 0.0
    %197 = vmatprep.subr.mxu0 0.0
    %198 = vmatpush2.msra.mxu0 0.0
    %199 = vmatprep.mubr.f32.mxu0 0.0
    %v200 = vand.u32 %v40, 4294901760
    %201 = vmatmul.mubr.f32.gmra.mxu0 %v200
    %v202 = vpop.f32.mrf.mxu0
    %v203 = vadd.f32 %v121, %v202
    %v204 = vpop.f32.mrf.mxu0
    %v205 = vadd.f32 %v123, %v204
    %206 = vdwg.mxu0
    %207 = vmatprep.subr.mxu0 0.0
    %208 = vmatpush1.msra.mxu0 0.0
    %209 = vmatprep.subr.mxu0 0.0
    %210 = vmatpush1.msra.mxu0 0.0
    %211 = vmatprep.subr.mxu0 0.0
    %212 = vmatpush1.msra.mxu0 0.0
    %213 = vmatprep.subr.mxu0 0.0
    %214 = vmatpush1.msra.mxu0 0.0
    %215 = vmatprep.subr.mxu0 0.0
    %216 = vmatpush1.msra.mxu0 0.0
    %217 = vmatprep.subr.mxu0 0.0
    %218 = vmatpush1.msra.mxu0 0.0
    %219 = vmatprep.subr.mxu0 0.0
    %220 = vmatpush1.msra.mxu0 0.0
    %221 = vmatprep.subr.mxu0 0.0
    %222 = vmatpush1.msra.mxu0 0.0
    %223 = vmatprep.subr.mxu0 0.0
    %224 = vmatpush1.msra.mxu0 0.0
    %225 = vmatprep.subr.mxu0 0.0
    %226 = vmatpush1.msra.mxu0 0.0
    %227 = vmatprep.subr.mxu0 0.0
    %228 = vmatpush1.msra.mxu0 0.0
    %229 = vmatprep.subr.mxu0 0.0
    %230 = vmatpush1.msra.mxu0 0.0
    %231 = vmatprep.subr.mxu0 0.0
    %232 = vmatpush1.msra.mxu0 0.0
    %233 = vmatprep.subr.mxu0 0.0
    %234 = vmatpush1.msra.mxu0 0.0
    %235 = vmatprep.subr.mxu0 0.0
    %236 = vmatpush1.msra.mxu0 0.0
    %v237 = vand.u32 %v45, 4294901760
    %v238 = vsub.f32 %v45, %v237
    %239 = vmatprep.subr.mxu0 %v238
    %v240 = vand.u32 %v43, 4294901760
    %v241 = vsub.f32 %v43, %v240
    %242 = vmatpush1.msra.mxu0 %v241
    %243 = vmatprep.subr.mxu0 0.0
    %244 = vmatpush2.msra.mxu0 0.0
    %245 = vmatprep.subr.mxu0 0.0
    %246 = vmatpush2.msra.mxu0 0.0
    %247 = vmatprep.subr.mxu0 0.0
    %248 = vmatpush2.msra.mxu0 0.0
    %249 = vmatprep.subr.mxu0 0.0
    %250 = vmatpush2.msra.mxu0 0.0
    %251 = vmatprep.subr.mxu0 0.0
    %252 = vmatpush2.msra.mxu0 0.0
    %253 = vmatprep.subr.mxu0 0.0
    %254 = vmatpush2.msra.mxu0 0.0
    %255 = vmatprep.subr.mxu0 0.0
    %256 = vmatpush2.msra.mxu0 0.0
    %257 = vmatprep.subr.mxu0 0.0
    %258 = vmatpush2.msra.mxu0 0.0
    %259 = vmatprep.subr.mxu0 0.0
    %260 = vmatpush2.msra.mxu0 0.0
    %261 = vmatprep.subr.mxu0 0.0
    %262 = vmatpush2.msra.mxu0 0.0
    %263 = vmatprep.subr.mxu0 0.0
    %264 = vmatpush2.msra.mxu0 0.0
    %265 = vmatprep.subr.mxu0 0.0
    %266 = vmatpush2.msra.mxu0 0.0
    %267 = vmatprep.subr.mxu0 0.0
    %268 = vmatpush2.msra.mxu0 0.0
    %269 = vmatprep.subr.mxu0 0.0
    %270 = vmatpush2.msra.mxu0 0.0
    %271 = vmatprep.subr.mxu0 0.0
    %272 = vmatpush2.msra.mxu0 0.0
    %273 = vmatprep.subr.mxu0 0.0
    %274 = vmatpush2.msra.mxu0 0.0
    %275 = vmatprep.mubr.f32.mxu0 0.0
    %v276 = vand.u32 %v40, 4294901760
    %v277 = vsub.f32 %v40, %v276
    %278 = vmatmul.mubr.f32.gmra.mxu0 %v277
    %v279 = vpop.f32.mrf.mxu0
    %v280 = vadd.f32 %v203, %v279
    %v281 = vpop.f32.mrf.mxu0
    %v282 = vadd.f32 %v205, %v281
    %283 = vdwg.mxu0
    %284 = vmatprep.subr.mxu0 0.0
    %285 = vmatpush1.msra.mxu0 0.0
    %286 = vmatprep.subr.mxu0 0.0
    %287 = vmatpush1.msra.mxu0 0.0
    %288 = vmatprep.subr.mxu0 0.0
    %289 = vmatpush1.msra.mxu0 0.0
    %290 = vmatprep.subr.mxu0 0.0
    %291 = vmatpush1.msra.mxu0 0.0
    %292 = vmatprep.subr.mxu0 0.0
    %293 = vmatpush1.msra.mxu0 0.0
    %294 = vmatprep.subr.mxu0 0.0
    %295 = vmatpush1.msra.mxu0 0.0
    %296 = vmatprep.subr.mxu0 0.0
    %297 = vmatpush1.msra.mxu0 0.0
    %298 = vmatprep.subr.mxu0 0.0
    %299 = vmatpush1.msra.mxu0 0.0
    %300 = vmatprep.subr.mxu0 0.0
    %301 = vmatpush1.msra.mxu0 0.0
    %302 = vmatprep.subr.mxu0 0.0
    %303 = vmatpush1.msra.mxu0 0.0
    %304 = vmatprep.subr.mxu0 0.0
    %305 = vmatpush1.msra.mxu0 0.0
    %306 = vmatprep.subr.mxu0 0.0
    %307 = vmatpush1.msra.mxu0 0.0
    %308 = vmatprep.subr.mxu0 0.0
    %309 = vmatpush1.msra.mxu0 0.0
    %310 = vmatprep.subr.mxu0 0.0
    %311 = vmatpush1.msra.mxu0 0.0
    %312 = vmatprep.subr.mxu0 0.0
    %313 = vmatpush1.msra.mxu0 0.0
    %v314 = vand.u32 %v45, 4294901760
    %315 = vmatprep.subr.mxu0 %v314
    %v316 = vand.u32 %v43, 4294901760
    %317 = vmatpush1.msra.mxu0 %v316
    %318 = vmatprep.subr.mxu0 0.0
    %319 = vmatpush2.msra.mxu0 0.0
    %320 = vmatprep.subr.mxu0 0.0
    %321 = vmatpush2.msra.mxu0 0.0
    %322 = vmatprep.subr.mxu0 0.0
    %323 = vmatpush2.msra.mxu0 0.0
    %324 = vmatprep.subr.mxu0 0.0
    %325 = vmatpush2.msra.mxu0 0.0
    %326 = vmatprep.subr.mxu0 0.0
    %327 = vmatpush2.msra.mxu0 0.0
    %328 = vmatprep.subr.mxu0 0.0
    %329 = vmatpush2.msra.mxu0 0.0
    %330 = vmatprep.subr.mxu0 0.0
    %331 = vmatpush2.msra.mxu0 0.0
    %332 = vmatprep.subr.mxu0 0.0
    %333 = vmatpush2.msra.mxu0 0.0
    %334 = vmatprep.subr.mxu0 0.0
    %335 = vmatpush2.msra.mxu0 0.0
    %336 = vmatprep.subr.mxu0 0.0
    %337 = vmatpush2.msra.mxu0 0.0
    %338 = vmatprep.subr.mxu0 0.0
    %339 = vmatpush2.msra.mxu0 0.0
    %340 = vmatprep.subr.mxu0 0.0
    %341 = vmatpush2.msra.mxu0 0.0
    %342 = vmatprep.subr.mxu0 0.0
    %343 = vmatpush2.msra.mxu0 0.0
    %344 = vmatprep.subr.mxu0 0.0
    %345 = vmatpush2.msra.mxu0 0.0
    %346 = vmatprep.subr.mxu0 0.0
    %347 = vmatpush2.msra.mxu0 0.0
    %348 = vmatprep.subr.mxu0 0.0
    %349 = vmatpush2.msra.mxu0 0.0
    %350 = vmatprep.mubr.f32.mxu0 0.0
    %v351 = vand.u32 %v40, 4294901760
    %v352 = vsub.f32 %v40, %v351
    %v353 = vand.u32 %v352, 4294901760
    %354 = vmatmul.mubr.f32.gmra.mxu0 %v353
    %v355 = vpop.f32.mrf.mxu0
    %v356 = vadd.f32 %v280, %v355
    %v357 = vpop.f32.mrf.mxu0
    %v358 = vadd.f32 %v282, %v357
    %359 = vdwg.mxu0
    %360 = vmatprep.subr.mxu0 0.0
    %361 = vmatpush1.msra.mxu0 0.0
    %362 = vmatprep.subr.mxu0 0.0
    %363 = vmatpush1.msra.mxu0 0.0
    %364 = vmatprep.subr.mxu0 0.0
    %365 = vmatpush1.msra.mxu0 0.0
    %366 = vmatprep.subr.mxu0 0.0
    %367 = vmatpush1.msra.mxu0 0.0
    %368 = vmatprep.subr.mxu0 0.0
    %369 = vmatpush1.msra.mxu0 0.0
    %370 = vmatprep.subr.mxu0 0.0
    %371 = vmatpush1.msra.mxu0 0.0
    %372 = vmatprep.subr.mxu0 0.0
    %373 = vmatpush1.msra.mxu0 0.0
    %374 = vmatprep.subr.mxu0 0.0
    %375 = vmatpush1.msra.mxu0 0.0
    %376 = vmatprep.subr.mxu0 0.0
    %377 = vmatpush1.msra.mxu0 0.0
    %378 = vmatprep.subr.mxu0 0.0
    %379 = vmatpush1.msra.mxu0 0.0
    %380 = vmatprep.subr.mxu0 0.0
    %381 = vmatpush1.msra.mxu0 0.0
    %382 = vmatprep.subr.mxu0 0.0
    %383 = vmatpush1.msra.mxu0 0.0
    %384 = vmatprep.subr.mxu0 0.0
    %385 = vmatpush1.msra.mxu0 0.0
    %386 = vmatprep.subr.mxu0 0.0
    %387 = vmatpush1.msra.mxu0 0.0
    %388 = vmatprep.subr.mxu0 0.0
    %389 = vmatpush1.msra.mxu0 0.0
    %v390 = vand.u32 %v45, 4294901760
    %v391 = vsub.f32 %v45, %v390
    %v392 = vand.u32 %v391, 4294901760
    %393 = vmatprep.subr.mxu0 %v392
    %v394 = vand.u32 %v43, 4294901760
    %v395 = vsub.f32 %v43, %v394
    %v396 = vand.u32 %v395, 4294901760
    %397 = vmatpush1.msra.mxu0 %v396
    %398 = vmatprep.subr.mxu0 0.0
    %399 = vmatpush2.msra.mxu0 0.0
    %400 = vmatprep.subr.mxu0 0.0
    %401 = vmatpush2.msra.mxu0 0.0
    %402 = vmatprep.subr.mxu0 0.0
    %403 = vmatpush2.msra.mxu0 0.0
    %404 = vmatprep.subr.mxu0 0.0
    %405 = vmatpush2.msra.mxu0 0.0
    %406 = vmatprep.subr.mxu0 0.0
    %407 = vmatpush2.msra.mxu0 0.0
    %408 = vmatprep.subr.mxu0 0.0
    %409 = vmatpush2.msra.mxu0 0.0
    %410 = vmatprep.subr.mxu0 0.0
    %411 = vmatpush2.msra.mxu0 0.0
    %412 = vmatprep.subr.mxu0 0.0
    %413 = vmatpush2.msra.mxu0 0.0
    %414 = vmatprep.subr.mxu0 0.0
    %415 = vmatpush2.msra.mxu0 0.0
    %416 = vmatprep.subr.mxu0 0.0
    %417 = vmatpush2.msra.mxu0 0.0
    %418 = vmatprep.subr.mxu0 0.0
    %419 = vmatpush2.msra.mxu0 0.0
    %420 = vmatprep.subr.mxu0 0.0
    %421 = vmatpush2.msra.mxu0 0.0
    %422 = vmatprep.subr.mxu0 0.0
    %423 = vmatpush2.msra.mxu0 0.0
    %424 = vmatprep.subr.mxu0 0.0
    %425 = vmatpush2.msra.mxu0 0.0
    %426 = vmatprep.subr.mxu0 0.0
    %427 = vmatpush2.msra.mxu0 0.0
    %428 = vmatprep.subr.mxu0 0.0
    %429 = vmatpush2.msra.mxu0 0.0
    %430 = vmatprep.mubr.f32.mxu0 0.0
    %v431 = vand.u32 %v40, 4294901760
    %432 = vmatmul.mubr.f32.gmra.mxu0 %v431
    %v433 = vpop.f32.mrf.mxu0
    %v434 = vadd.f32 %v356, %v433
    %v435 = vpop.f32.mrf.mxu0
    %v436 = vadd.f32 %v358, %v435
    %437 = vdwg.mxu0
    %438 = vmatprep.subr.mxu0 0.0
    %439 = vmatpush1.msra.mxu0 0.0
    %440 = vmatprep.subr.mxu0 0.0
    %441 = vmatpush1.msra.mxu0 0.0
    %442 = vmatprep.subr.mxu0 0.0
    %443 = vmatpush1.msra.mxu0 0.0
    %444 = vmatprep.subr.mxu0 0.0
    %445 = vmatpush1.msra.mxu0 0.0
    %446 = vmatprep.subr.mxu0 0.0
    %447 = vmatpush1.msra.mxu0 0.0
    %448 = vmatprep.subr.mxu0 0.0
    %449 = vmatpush1.msra.mxu0 0.0
    %450 = vmatprep.subr.mxu0 0.0
    %451 = vmatpush1.msra.mxu0 0.0
    %452 = vmatprep.subr.mxu0 0.0
    %453 = vmatpush1.msra.mxu0 0.0
    %454 = vmatprep.subr.mxu0 0.0
    %455 = vmatpush1.msra.mxu0 0.0
    %456 = vmatprep.subr.mxu0 0.0
    %457 = vmatpush1.msra.mxu0 0.0
    %458 = vmatprep.subr.mxu0 0.0
    %459 = vmatpush1.msra.mxu0 0.0
    %460 = vmatprep.subr.mxu0 0.0
    %461 = vmatpush1.msra.mxu0 0.0
    %462 = vmatprep.subr.mxu0 0.0
    %463 = vmatpush1.msra.mxu0 0.0
    %464 = vmatprep.subr.mxu0 0.0
    %465 = vmatpush1.msra.mxu0 0.0
    %466 = vmatprep.subr.mxu0 0.0
    %467 = vmatpush1.msra.mxu0 0.0
    %v468 = vand.u32 %v45, 4294901760
    %469 = vmatprep.subr.mxu0 %v468
    %v470 = vand.u32 %v43, 4294901760
    %471 = vmatpush1.msra.mxu0 %v470
    %472 = vmatprep.subr.mxu0 0.0
    %473 = vmatpush2.msra.mxu0 0.0
    %474 = vmatprep.subr.mxu0 0.0
    %475 = vmatpush2.msra.mxu0 0.0
    %476 = vmatprep.subr.mxu0 0.0
    %477 = vmatpush2.msra.mxu0 0.0
    %478 = vmatprep.subr.mxu0 0.0
    %479 = vmatpush2.msra.mxu0 0.0
    %480 = vmatprep.subr.mxu0 0.0
    %481 = vmatpush2.msra.mxu0 0.0
    %482 = vmatprep.subr.mxu0 0.0
    %483 = vmatpush2.msra.mxu0 0.0
    %484 = vmatprep.subr.mxu0 0.0
    %485 = vmatpush2.msra.mxu0 0.0
    %486 = vmatprep.subr.mxu0 0.0
    %487 = vmatpush2.msra.mxu0 0.0
    %488 = vmatprep.subr.mxu0 0.0
    %489 = vmatpush2.msra.mxu0 0.0
    %490 = vmatprep.subr.mxu0 0.0
    %491 = vmatpush2.msra.mxu0 0.0
    %492 = vmatprep.subr.mxu0 0.0
    %493 = vmatpush2.msra.mxu0 0.0
    %494 = vmatprep.subr.mxu0 0.0
    %495 = vmatpush2.msra.mxu0 0.0
    %496 = vmatprep.subr.mxu0 0.0
    %497 = vmatpush2.msra.mxu0 0.0
    %498 = vmatprep.subr.mxu0 0.0
    %499 = vmatpush2.msra.mxu0 0.0
    %500 = vmatprep.subr.mxu0 0.0
    %501 = vmatpush2.msra.mxu0 0.0
    %502 = vmatprep.subr.mxu0 0.0
    %503 = vmatpush2.msra.mxu0 0.0
    %504 = vmatprep.mubr.f32.mxu0 0.0
    %v505 = vand.u32 %v40, 4294901760
    %506 = vmatmul.mubr.f32.gmra.mxu0 %v505
    %v507 = vpop.f32.mrf.mxu0
    %v508 = vadd.f32 %v434, %v507
    %v509 = vpop.f32.mrf.mxu0
    %v510 = vadd.f32 %v436, %v509
    %511 = vdwg.mxu0
    %v514 = vcombine.low %v508, %v510
    %516 = vst [vmem:[%s3] sm:$0x77] %v514
    %s517 = scalar_lea.vmem [#allocation2], 8
    %v518 = vld [vmem:[%s517] sm:$0xff]
    %v520 = vcombine.high %v518, %v518
    %v521 = vsel %vm42, %v518, 0
    %v523 = vsel %vm42, %v520, 0
    %525 = vmatprep.subr.mxu0 0.0
    %526 = vmatpush1.msra.mxu0 0.0
    %527 = vmatprep.subr.mxu0 0.0
    %528 = vmatpush1.msra.mxu0 0.0
    %529 = vmatprep.subr.mxu0 0.0
    %530 = vmatpush1.msra.mxu0 0.0
    %531 = vmatprep.subr.mxu0 0.0
    %532 = vmatpush1.msra.mxu0 0.0
    %533 = vmatprep.subr.mxu0 0.0
    %534 = vmatpush1.msra.mxu0 0.0
    %535 = vmatprep.subr.mxu0 0.0
    %536 = vmatpush1.msra.mxu0 0.0
    %537 = vmatprep.subr.mxu0 0.0
    %538 = vmatpush1.msra.mxu0 0.0
    %539 = vmatprep.subr.mxu0 0.0
    %540 = vmatpush1.msra.mxu0 0.0
    %541 = vmatprep.subr.mxu0 0.0
    %542 = vmatpush1.msra.mxu0 0.0
    %543 = vmatprep.subr.mxu0 0.0
    %544 = vmatpush1.msra.mxu0 0.0
    %545 = vmatprep.subr.mxu0 0.0
    %546 = vmatpush1.msra.mxu0 0.0
    %547 = vmatprep.subr.mxu0 0.0
    %548 = vmatpush1.msra.mxu0 0.0
    %549 = vmatprep.subr.mxu0 0.0
    %550 = vmatpush1.msra.mxu0 0.0
    %551 = vmatprep.subr.mxu0 0.0
    %552 = vmatpush1.msra.mxu0 0.0
    %553 = vmatprep.subr.mxu0 0.0
    %554 = vmatpush1.msra.mxu0 0.0
    %v555 = vand.u32 %v523, 4294901760
    %556 = vmatprep.subr.mxu0 %v555
    %v557 = vand.u32 %v521, 4294901760
    %558 = vmatpush1.msra.mxu0 %v557
    %559 = vmatprep.subr.mxu0 0.0
    %560 = vmatpush2.msra.mxu0 0.0
    %561 = vmatprep.subr.mxu0 0.0
    %562 = vmatpush2.msra.mxu0 0.0
    %563 = vmatprep.subr.mxu0 0.0
    %564 = vmatpush2.msra.mxu0 0.0
    %565 = vmatprep.subr.mxu0 0.0
    %566 = vmatpush2.msra.mxu0 0.0
    %567 = vmatprep.subr.mxu0 0.0
    %568 = vmatpush2.msra.mxu0 0.0
    %569 = vmatprep.subr.mxu0 0.0
    %570 = vmatpush2.msra.mxu0 0.0
    %571 = vmatprep.subr.mxu0 0.0
    %572 = vmatpush2.msra.mxu0 0.0
    %573 = vmatprep.subr.mxu0 0.0
    %574 = vmatpush2.msra.mxu0 0.0
    %575 = vmatprep.subr.mxu0 0.0
    %576 = vmatpush2.msra.mxu0 0.0
    %577 = vmatprep.subr.mxu0 0.0
    %578 = vmatpush2.msra.mxu0 0.0
    %579 = vmatprep.subr.mxu0 0.0
    %580 = vmatpush2.msra.mxu0 0.0
    %581 = vmatprep.subr.mxu0 0.0
    %582 = vmatpush2.msra.mxu0 0.0
    %583 = vmatprep.subr.mxu0 0.0
    %584 = vmatpush2.msra.mxu0 0.0
    %585 = vmatprep.subr.mxu0 0.0
    %586 = vmatpush2.msra.mxu0 0.0
    %587 = vmatprep.subr.mxu0 0.0
    %588 = vmatpush2.msra.mxu0 0.0
    %589 = vmatprep.subr.mxu0 0.0
    %590 = vmatpush2.msra.mxu0 0.0
    %591 = vmatprep.mubr.f32.mxu0 0.0
    %v592 = vand.u32 %v40, 4294901760
    %v593 = vsub.f32 %v40, %v592
    %v594 = vand.u32 %v593, 4294901760
    %v595 = vsub.f32 %v593, %v594
    %v596 = vand.u32 %v595, 4294901760
    %597 = vmatmul.mubr.f32.gmra.mxu0 %v596
    %v598 = vpop.f32.mrf.mxu0
    %v599 = vadd.f32 %v34, %v598
    %v600 = vpop.f32.mrf.mxu0
    %v601 = vadd.f32 %v34, %v600
    %602 = vdwg.mxu0
    %603 = vmatprep.subr.mxu0 0.0
    %604 = vmatpush1.msra.mxu0 0.0
    %605 = vmatprep.subr.mxu0 0.0
    %606 = vmatpush1.msra.mxu0 0.0
    %607 = vmatprep.subr.mxu0 0.0
    %608 = vmatpush1.msra.mxu0 0.0
    %609 = vmatprep.subr.mxu0 0.0
    %610 = vmatpush1.msra.mxu0 0.0
    %611 = vmatprep.subr.mxu0 0.0
    %612 = vmatpush1.msra.mxu0 0.0
    %613 = vmatprep.subr.mxu0 0.0
    %614 = vmatpush1.msra.mxu0 0.0
    %615 = vmatprep.subr.mxu0 0.0
    %616 = vmatpush1.msra.mxu0 0.0
    %617 = vmatprep.subr.mxu0 0.0
    %618 = vmatpush1.msra.mxu0 0.0
    %619 = vmatprep.subr.mxu0 0.0
    %620 = vmatpush1.msra.mxu0 0.0
    %621 = vmatprep.subr.mxu0 0.0
    %622 = vmatpush1.msra.mxu0 0.0
    %623 = vmatprep.subr.mxu0 0.0
    %624 = vmatpush1.msra.mxu0 0.0
    %625 = vmatprep.subr.mxu0 0.0
    %626 = vmatpush1.msra.mxu0 0.0
    %627 = vmatprep.subr.mxu0 0.0
    %628 = vmatpush1.msra.mxu0 0.0
    %629 = vmatprep.subr.mxu0 0.0
    %630 = vmatpush1.msra.mxu0 0.0
    %631 = vmatprep.subr.mxu0 0.0
    %632 = vmatpush1.msra.mxu0 0.0
    %v633 = vand.u32 %v523, 4294901760
    %v634 = vsub.f32 %v523, %v633
    %v635 = vand.u32 %v634, 4294901760
    %v636 = vsub.f32 %v634, %v635
    %v637 = vand.u32 %v636, 4294901760
    %638 = vmatprep.subr.mxu0 %v637
    %v639 = vand.u32 %v521, 4294901760
    %v640 = vsub.f32 %v521, %v639
    %v641 = vand.u32 %v640, 4294901760
    %v642 = vsub.f32 %v640, %v641
    %v643 = vand.u32 %v642, 4294901760
    %644 = vmatpush1.msra.mxu0 %v643
    %645 = vmatprep.subr.mxu0 0.0
    %646 = vmatpush2.msra.mxu0 0.0
    %647 = vmatprep.subr.mxu0 0.0
    %648 = vmatpush2.msra.mxu0 0.0
    %649 = vmatprep.subr.mxu0 0.0
    %650 = vmatpush2.msra.mxu0 0.0
    %651 = vmatprep.subr.mxu0 0.0
    %652 = vmatpush2.msra.mxu0 0.0
    %653 = vmatprep.subr.mxu0 0.0
    %654 = vmatpush2.msra.mxu0 0.0
    %655 = vmatprep.subr.mxu0 0.0
    %656 = vmatpush2.msra.mxu0 0.0
    %657 = vmatprep.subr.mxu0 0.0
    %658 = vmatpush2.msra.mxu0 0.0
    %659 = vmatprep.subr.mxu0 0.0
    %660 = vmatpush2.msra.mxu0 0.0
    %661 = vmatprep.subr.mxu0 0.0
    %662 = vmatpush2.msra.mxu0 0.0
    %663 = vmatprep.subr.mxu0 0.0
    %664 = vmatpush2.msra.mxu0 0.0
    %665 = vmatprep.subr.mxu0 0.0
    %666 = vmatpush2.msra.mxu0 0.0
    %667 = vmatprep.subr.mxu0 0.0
    %668 = vmatpush2.msra.mxu0 0.0
    %669 = vmatprep.subr.mxu0 0.0
    %670 = vmatpush2.msra.mxu0 0.0
    %671 = vmatprep.subr.mxu0 0.0
    %672 = vmatpush2.msra.mxu0 0.0
    %673 = vmatprep.subr.mxu0 0.0
    %674 = vmatpush2.msra.mxu0 0.0
    %675 = vmatprep.subr.mxu0 0.0
    %676 = vmatpush2.msra.mxu0 0.0
    %677 = vmatprep.mubr.f32.mxu0 0.0
    %v678 = vand.u32 %v40, 4294901760
    %679 = vmatmul.mubr.f32.gmra.mxu0 %v678
    %v680 = vpop.f32.mrf.mxu0
    %v681 = vadd.f32 %v599, %v680
    %v682 = vpop.f32.mrf.mxu0
    %v683 = vadd.f32 %v601, %v682
    %684 = vdwg.mxu0
    %685 = vmatprep.subr.mxu0 0.0
    %686 = vmatpush1.msra.mxu0 0.0
    %687 = vmatprep.subr.mxu0 0.0
    %688 = vmatpush1.msra.mxu0 0.0
    %689 = vmatprep.subr.mxu0 0.0
    %690 = vmatpush1.msra.mxu0 0.0
    %691 = vmatprep.subr.mxu0 0.0
    %692 = vmatpush1.msra.mxu0 0.0
    %693 = vmatprep.subr.mxu0 0.0
    %694 = vmatpush1.msra.mxu0 0.0
    %695 = vmatprep.subr.mxu0 0.0
    %696 = vmatpush1.msra.mxu0 0.0
    %697 = vmatprep.subr.mxu0 0.0
    %698 = vmatpush1.msra.mxu0 0.0
    %699 = vmatprep.subr.mxu0 0.0
    %700 = vmatpush1.msra.mxu0 0.0
    %701 = vmatprep.subr.mxu0 0.0
    %702 = vmatpush1.msra.mxu0 0.0
    %703 = vmatprep.subr.mxu0 0.0
    %704 = vmatpush1.msra.mxu0 0.0
    %705 = vmatprep.subr.mxu0 0.0
    %706 = vmatpush1.msra.mxu0 0.0
    %707 = vmatprep.subr.mxu0 0.0
    %708 = vmatpush1.msra.mxu0 0.0
    %709 = vmatprep.subr.mxu0 0.0
    %710 = vmatpush1.msra.mxu0 0.0
    %711 = vmatprep.subr.mxu0 0.0
    %712 = vmatpush1.msra.mxu0 0.0
    %713 = vmatprep.subr.mxu0 0.0
    %714 = vmatpush1.msra.mxu0 0.0
    %v715 = vand.u32 %v523, 4294901760
    %v716 = vsub.f32 %v523, %v715
    %717 = vmatprep.subr.mxu0 %v716
    %v718 = vand.u32 %v521, 4294901760
    %v719 = vsub.f32 %v521, %v718
    %720 = vmatpush1.msra.mxu0 %v719
    %721 = vmatprep.subr.mxu0 0.0
    %722 = vmatpush2.msra.mxu0 0.0
    %723 = vmatprep.subr.mxu0 0.0
    %724 = vmatpush2.msra.mxu0 0.0
    %725 = vmatprep.subr.mxu0 0.0
    %726 = vmatpush2.msra.mxu0 0.0
    %727 = vmatprep.subr.mxu0 0.0
    %728 = vmatpush2.msra.mxu0 0.0
    %729 = vmatprep.subr.mxu0 0.0
    %730 = vmatpush2.msra.mxu0 0.0
    %731 = vmatprep.subr.mxu0 0.0
    %732 = vmatpush2.msra.mxu0 0.0
    %733 = vmatprep.subr.mxu0 0.0
    %734 = vmatpush2.msra.mxu0 0.0
    %735 = vmatprep.subr.mxu0 0.0
    %736 = vmatpush2.msra.mxu0 0.0
    %737 = vmatprep.subr.mxu0 0.0
    %738 = vmatpush2.msra.mxu0 0.0
    %739 = vmatprep.subr.mxu0 0.0
    %740 = vmatpush2.msra.mxu0 0.0
    %741 = vmatprep.subr.mxu0 0.0
    %742 = vmatpush2.msra.mxu0 0.0
    %743 = vmatprep.subr.mxu0 0.0
    %744 = vmatpush2.msra.mxu0 0.0
    %745 = vmatprep.subr.mxu0 0.0
    %746 = vmatpush2.msra.mxu0 0.0
    %747 = vmatprep.subr.mxu0 0.0
    %748 = vmatpush2.msra.mxu0 0.0
    %749 = vmatprep.subr.mxu0 0.0
    %750 = vmatpush2.msra.mxu0 0.0
    %751 = vmatprep.subr.mxu0 0.0
    %752 = vmatpush2.msra.mxu0 0.0
    %753 = vmatprep.mubr.f32.mxu0 0.0
    %v754 = vand.u32 %v40, 4294901760
    %v755 = vsub.f32 %v40, %v754
    %756 = vmatmul.mubr.f32.gmra.mxu0 %v755
    %v757 = vpop.f32.mrf.mxu0
    %v758 = vadd.f32 %v681, %v757
    %v759 = vpop.f32.mrf.mxu0
    %v760 = vadd.f32 %v683, %v759
    %761 = vdwg.mxu0
    %762 = vmatprep.subr.mxu0 0.0
    %763 = vmatpush1.msra.mxu0 0.0
    %764 = vmatprep.subr.mxu0 0.0
    %765 = vmatpush1.msra.mxu0 0.0
    %766 = vmatprep.subr.mxu0 0.0
    %767 = vmatpush1.msra.mxu0 0.0
    %768 = vmatprep.subr.mxu0 0.0
    %769 = vmatpush1.msra.mxu0 0.0
    %770 = vmatprep.subr.mxu0 0.0
    %771 = vmatpush1.msra.mxu0 0.0
    %772 = vmatprep.subr.mxu0 0.0
    %773 = vmatpush1.msra.mxu0 0.0
    %774 = vmatprep.subr.mxu0 0.0
    %775 = vmatpush1.msra.mxu0 0.0
    %776 = vmatprep.subr.mxu0 0.0
    %777 = vmatpush1.msra.mxu0 0.0
    %778 = vmatprep.subr.mxu0 0.0
    %779 = vmatpush1.msra.mxu0 0.0
    %780 = vmatprep.subr.mxu0 0.0
    %781 = vmatpush1.msra.mxu0 0.0
    %782 = vmatprep.subr.mxu0 0.0
    %783 = vmatpush1.msra.mxu0 0.0
    %784 = vmatprep.subr.mxu0 0.0
    %785 = vmatpush1.msra.mxu0 0.0
    %786 = vmatprep.subr.mxu0 0.0
    %787 = vmatpush1.msra.mxu0 0.0
    %788 = vmatprep.subr.mxu0 0.0
    %789 = vmatpush1.msra.mxu0 0.0
    %790 = vmatprep.subr.mxu0 0.0
    %791 = vmatpush1.msra.mxu0 0.0
    %v792 = vand.u32 %v523, 4294901760
    %793 = vmatprep.subr.mxu0 %v792
    %v794 = vand.u32 %v521, 4294901760
    %795 = vmatpush1.msra.mxu0 %v794
    %796 = vmatprep.subr.mxu0 0.0
    %797 = vmatpush2.msra.mxu0 0.0
    %798 = vmatprep.subr.mxu0 0.0
    %799 = vmatpush2.msra.mxu0 0.0
    %800 = vmatprep.subr.mxu0 0.0
    %801 = vmatpush2.msra.mxu0 0.0
    %802 = vmatprep.subr.mxu0 0.0
    %803 = vmatpush2.msra.mxu0 0.0
    %804 = vmatprep.subr.mxu0 0.0
    %805 = vmatpush2.msra.mxu0 0.0
    %806 = vmatprep.subr.mxu0 0.0
    %807 = vmatpush2.msra.mxu0 0.0
    %808 = vmatprep.subr.mxu0 0.0
    %809 = vmatpush2.msra.mxu0 0.0
    %810 = vmatprep.subr.mxu0 0.0
    %811 = vmatpush2.msra.mxu0 0.0
    %812 = vmatprep.subr.mxu0 0.0
    %813 = vmatpush2.msra.mxu0 0.0
    %814 = vmatprep.subr.mxu0 0.0
    %815 = vmatpush2.msra.mxu0 0.0
    %816 = vmatprep.subr.mxu0 0.0
    %817 = vmatpush2.msra.mxu0 0.0
    %818 = vmatprep.subr.mxu0 0.0
    %819 = vmatpush2.msra.mxu0 0.0
    %820 = vmatprep.subr.mxu0 0.0
    %821 = vmatpush2.msra.mxu0 0.0
    %822 = vmatprep.subr.mxu0 0.0
    %823 = vmatpush2.msra.mxu0 0.0
    %824 = vmatprep.subr.mxu0 0.0
    %825 = vmatpush2.msra.mxu0 0.0
    %826 = vmatprep.subr.mxu0 0.0
    %827 = vmatpush2.msra.mxu0 0.0
    %828 = vmatprep.mubr.f32.mxu0 0.0
    %v829 = vand.u32 %v40, 4294901760
    %v830 = vsub.f32 %v40, %v829
    %v831 = vand.u32 %v830, 4294901760
    %832 = vmatmul.mubr.f32.gmra.mxu0 %v831
    %v833 = vpop.f32.mrf.mxu0
    %v834 = vadd.f32 %v758, %v833
    %v835 = vpop.f32.mrf.mxu0
    %v836 = vadd.f32 %v760, %v835
    %837 = vdwg.mxu0
    %838 = vmatprep.subr.mxu0 0.0
    %839 = vmatpush1.msra.mxu0 0.0
    %840 = vmatprep.subr.mxu0 0.0
    %841 = vmatpush1.msra.mxu0 0.0
    %842 = vmatprep.subr.mxu0 0.0
    %843 = vmatpush1.msra.mxu0 0.0
    %844 = vmatprep.subr.mxu0 0.0
    %845 = vmatpush1.msra.mxu0 0.0
    %846 = vmatprep.subr.mxu0 0.0
    %847 = vmatpush1.msra.mxu0 0.0
    %848 = vmatprep.subr.mxu0 0.0
    %849 = vmatpush1.msra.mxu0 0.0
    %850 = vmatprep.subr.mxu0 0.0
    %851 = vmatpush1.msra.mxu0 0.0
    %852 = vmatprep.subr.mxu0 0.0
    %853 = vmatpush1.msra.mxu0 0.0
    %854 = vmatprep.subr.mxu0 0.0
    %855 = vmatpush1.msra.mxu0 0.0
    %856 = vmatprep.subr.mxu0 0.0
    %857 = vmatpush1.msra.mxu0 0.0
    %858 = vmatprep.subr.mxu0 0.0
    %859 = vmatpush1.msra.mxu0 0.0
    %860 = vmatprep.subr.mxu0 0.0
    %861 = vmatpush1.msra.mxu0 0.0
    %862 = vmatprep.subr.mxu0 0.0
    %863 = vmatpush1.msra.mxu0 0.0
    %864 = vmatprep.subr.mxu0 0.0
    %865 = vmatpush1.msra.mxu0 0.0
    %866 = vmatprep.subr.mxu0 0.0
    %867 = vmatpush1.msra.mxu0 0.0
    %v868 = vand.u32 %v523, 4294901760
    %v869 = vsub.f32 %v523, %v868
    %v870 = vand.u32 %v869, 4294901760
    %871 = vmatprep.subr.mxu0 %v870
    %v872 = vand.u32 %v521, 4294901760
    %v873 = vsub.f32 %v521, %v872
    %v874 = vand.u32 %v873, 4294901760
    %875 = vmatpush1.msra.mxu0 %v874
    %876 = vmatprep.subr.mxu0 0.0
    %877 = vmatpush2.msra.mxu0 0.0
    %878 = vmatprep.subr.mxu0 0.0
    %879 = vmatpush2.msra.mxu0 0.0
    %880 = vmatprep.subr.mxu0 0.0
    %881 = vmatpush2.msra.mxu0 0.0
    %882 = vmatprep.subr.mxu0 0.0
    %883 = vmatpush2.msra.mxu0 0.0
    %884 = vmatprep.subr.mxu0 0.0
    %885 = vmatpush2.msra.mxu0 0.0
    %886 = vmatprep.subr.mxu0 0.0
    %887 = vmatpush2.msra.mxu0 0.0
    %888 = vmatprep.subr.mxu0 0.0
    %889 = vmatpush2.msra.mxu0 0.0
    %890 = vmatprep.subr.mxu0 0.0
    %891 = vmatpush2.msra.mxu0 0.0
    %892 = vmatprep.subr.mxu0 0.0
    %893 = vmatpush2.msra.mxu0 0.0
    %894 = vmatprep.subr.mxu0 0.0
    %895 = vmatpush2.msra.mxu0 0.0
    %896 = vmatprep.subr.mxu0 0.0
    %897 = vmatpush2.msra.mxu0 0.0
    %898 = vmatprep.subr.mxu0 0.0
    %899 = vmatpush2.msra.mxu0 0.0
    %900 = vmatprep.subr.mxu0 0.0
    %901 = vmatpush2.msra.mxu0 0.0
    %902 = vmatprep.subr.mxu0 0.0
    %903 = vmatpush2.msra.mxu0 0.0
    %904 = vmatprep.subr.mxu0 0.0
    %905 = vmatpush2.msra.mxu0 0.0
    %906 = vmatprep.subr.mxu0 0.0
    %907 = vmatpush2.msra.mxu0 0.0
    %908 = vmatprep.mubr.f32.mxu0 0.0
    %v909 = vand.u32 %v40, 4294901760
    %910 = vmatmul.mubr.f32.gmra.mxu0 %v909
    %v911 = vpop.f32.mrf.mxu0
    %v912 = vadd.f32 %v834, %v911
    %v913 = vpop.f32.mrf.mxu0
    %v914 = vadd.f32 %v836, %v913
    %915 = vdwg.mxu0
    %916 = vmatprep.subr.mxu0 0.0
    %917 = vmatpush1.msra.mxu0 0.0
    %918 = vmatprep.subr.mxu0 0.0
    %919 = vmatpush1.msra.mxu0 0.0
    %920 = vmatprep.subr.mxu0 0.0
    %921 = vmatpush1.msra.mxu0 0.0
    %922 = vmatprep.subr.mxu0 0.0
    %923 = vmatpush1.msra.mxu0 0.0
    %924 = vmatprep.subr.mxu0 0.0
    %925 = vmatpush1.msra.mxu0 0.0
    %926 = vmatprep.subr.mxu0 0.0
    %927 = vmatpush1.msra.mxu0 0.0
    %928 = vmatprep.subr.mxu0 0.0
    %929 = vmatpush1.msra.mxu0 0.0
    %930 = vmatprep.subr.mxu0 0.0
    %931 = vmatpush1.msra.mxu0 0.0
    %932 = vmatprep.subr.mxu0 0.0
    %933 = vmatpush1.msra.mxu0 0.0
    %934 = vmatprep.subr.mxu0 0.0
    %935 = vmatpush1.msra.mxu0 0.0
    %936 = vmatprep.subr.mxu0 0.0
    %937 = vmatpush1.msra.mxu0 0.0
    %938 = vmatprep.subr.mxu0 0.0
    %939 = vmatpush1.msra.mxu0 0.0
    %940 = vmatprep.subr.mxu0 0.0
    %941 = vmatpush1.msra.mxu0 0.0
    %942 = vmatprep.subr.mxu0 0.0
    %943 = vmatpush1.msra.mxu0 0.0
    %944 = vmatprep.subr.mxu0 0.0
    %945 = vmatpush1.msra.mxu0 0.0
    %v946 = vand.u32 %v523, 4294901760
    %947 = vmatprep.subr.mxu0 %v946
    %v948 = vand.u32 %v521, 4294901760
    %949 = vmatpush1.msra.mxu0 %v948
    %950 = vmatprep.subr.mxu0 0.0
    %951 = vmatpush2.msra.mxu0 0.0
    %952 = vmatprep.subr.mxu0 0.0
    %953 = vmatpush2.msra.mxu0 0.0
    %954 = vmatprep.subr.mxu0 0.0
    %955 = vmatpush2.msra.mxu0 0.0
    %956 = vmatprep.subr.mxu0 0.0
    %957 = vmatpush2.msra.mxu0 0.0
    %958 = vmatprep.subr.mxu0 0.0
    %959 = vmatpush2.msra.mxu0 0.0
    %960 = vmatprep.subr.mxu0 0.0
    %961 = vmatpush2.msra.mxu0 0.0
    %962 = vmatprep.subr.mxu0 0.0
    %963 = vmatpush2.msra.mxu0 0.0
    %964 = vmatprep.subr.mxu0 0.0
    %965 = vmatpush2.msra.mxu0 0.0
    %966 = vmatprep.subr.mxu0 0.0
    %967 = vmatpush2.msra.mxu0 0.0
    %968 = vmatprep.subr.mxu0 0.0
    %969 = vmatpush2.msra.mxu0 0.0
    %970 = vmatprep.subr.mxu0 0.0
    %971 = vmatpush2.msra.mxu0 0.0
    %972 = vmatprep.subr.mxu0 0.0
    %973 = vmatpush2.msra.mxu0 0.0
    %974 = vmatprep.subr.mxu0 0.0
    %975 = vmatpush2.msra.mxu0 0.0
    %976 = vmatprep.subr.mxu0 0.0
    %977 = vmatpush2.msra.mxu0 0.0
    %978 = vmatprep.subr.mxu0 0.0
    %979 = vmatpush2.msra.mxu0 0.0
    %980 = vmatprep.subr.mxu0 0.0
    %981 = vmatpush2.msra.mxu0 0.0
    %982 = vmatprep.mubr.f32.mxu0 0.0
    %v983 = vand.u32 %v40, 4294901760
    %984 = vmatmul.mubr.f32.gmra.mxu0 %v983
    %v985 = vpop.f32.mrf.mxu0
    %v986 = vadd.f32 %v912, %v985
    %v987 = vpop.f32.mrf.mxu0
    %v988 = vadd.f32 %v914, %v987
    %989 = vdwg.mxu0
    %v992 = vcombine.low %v986, %v988
    %s994 = scalar_lea.vmem %s3, 8
    %995 = vst [vmem:[%s994] sm:$0x77] %v992
    // Predicated region
    $region18: #{tpu_custom_call.1} parent=1 // pred_check
      _
    $region19: #{tpu_custom_call.1} parent=1 // pred_check_branch
      %997 = sbr.rel (0) target = $region21
    $region20: #{tpu_custom_call.1} parent=1 // pred_region
      _
    $region21: #{tpu_custom_call.1} parent=1 // pred_fallthru
      _
    // Predicated region
    $region22: #{tpu_custom_call.1} parent=1 // pred_check
      _
    $region23: #{tpu_custom_call.1} parent=1 // pred_check_branch
      %999 = sbr.rel (0) target = $region25
    $region24: #{tpu_custom_call.1} parent=1 // pred_region
      _
    $region25: #{tpu_custom_call.1} parent=1 // pred_fallthru
      _
    %1000 = vsyncpa [#allocation3], 1

</llo_original>
